<compile_context>
chip_gen: v6e
topology: v6e:2x2x1
jax: 0.10.0
libtpu: 0.0.40
codegen_flags: <defaults>
</compile_context>

<pallas_src>
import jax
import jax.numpy as jnp
from jax.experimental import pallas as pl
from jax.experimental.pallas import tpu as pltpu


def _pos_embedding_kernel(x_ref, w_ref, o_ref):
    # x_ref: (B, tS, H), w_ref: (tS, H), o_ref: (B, tS, H)
    # Upcast to f32, add (broadcast over batch), single cast on store.
    x = x_ref[...].astype(jnp.float32)
    w = w_ref[...].astype(jnp.float32)
    o_ref[...] = (x + w[None, :, :]).astype(o_ref.dtype)


def _round_up(a, m):
    return -(-a // m) * m


def _pick_seq_tile(S, per_row_bytes, budget_bytes=12 << 20):
    """Pick the sequence-tile row count.

    - multiple of 8 (or == S when S < 16, where the full-extent block is used),
    - sized so one buffer-set (x + weight + out blocks) stays under
      `budget_bytes` (double-buffered total ~= 2 * budget),
    - gives >= 2 grid steps whenever S allows, so v7x's two TensorCores both
      get work.
    """
    max_rows = max(8, (budget_bytes // max(per_row_bytes, 1)) // 8 * 8)
    if S < 16:
        return S  # single (possibly unaligned) full-extent block
    half = _round_up(_round_up(S, 8) // 2, 8)   # ~half the sequence, 8-aligned
    return max(8, min(max_rows, half))


def pos_embedding_forward(x, weight, out_dtype=None):
    """y = cast(x + weight[0:S], out_dtype) for x of shape (B, S, H), weight (V, H)."""
    B, S, H = x.shape
    V, Hw = weight.shape
    assert Hw == H and V >= S
    out_dtype = jnp.dtype(out_dtype) if out_dtype is not None else jnp.dtype(x.dtype)

    x_item = jnp.dtype(x.dtype).itemsize
    w_item = jnp.dtype(weight.dtype).itemsize
    o_item = out_dtype.itemsize

    # Bytes per sequence row for ONE buffer-set: x block + weight block + out block.
    per_row_bytes = H * (B * x_item + w_item + B * o_item)
    tS = _pick_seq_tile(S, per_row_bytes)
    nS = pl.cdiv(S, tS)
    grid = (nS,)

    in_specs = [
        pl.BlockSpec((B, tS, H), lambda s: (0, s, 0)),   # x        (batch folded in)
        pl.BlockSpec((tS, H), lambda s: (s, 0)),         # weight[0:S] tile
    ]
    out_spec = pl.BlockSpec((B, tS, H), lambda s: (0, s, 0))

    # Reuse x's HBM buffer for the output when dtypes match (pure elementwise,
    # every grid step reads/writes the same disjoint block).
    io_aliases = {0: 0} if out_dtype == jnp.dtype(x.dtype) else {}

    cost = pl.CostEstimate(
        flops=B * S * H,
        transcendentals=0,
        bytes_accessed=B * S * H * (x_item + o_item) + S * H * w_item,
    )

    return pl.pallas_call(
        _pos_embedding_kernel,
        out_shape=jax.ShapeDtypeStruct((B, S, H), out_dtype),
        grid_spec=pltpu.PrefetchScalarGridSpec(
            num_scalar_prefetch=0,
            grid=grid,
            in_specs=in_specs,
            out_specs=out_spec,
        ),
        compiler_params=pltpu.CompilerParams(
            dimension_semantics=("parallel",),
            vmem_limit_bytes=48 << 20,   # safe on v5e/v6e (128 MiB) and v7x (64 MiB)
        ),
        input_output_aliases=io_aliases,
        cost_estimate=cost,
    )(x, weight)


class PosEmbedding:
    """Minimal JAX mirror of the PyTorch module (synthetic weights).

    Weight is stored in bf16, mirroring exllamav3's float2half=True load path.
    """

    def __init__(self, hidden_size, vocab_size, out_dtype=None, seed=0,
                 weight_dtype=jnp.bfloat16):
        self.hidden_size = hidden_size
        self.vocab_size = vocab_size       # number of positions
        self.out_dtype = out_dtype
        key = jax.random.PRNGKey(seed)
        self.weight = jax.random.normal(
            key, (vocab_size, hidden_size), dtype=jnp.float32
        ).astype(weight_dtype)

    def forward(self, x, out_dtype=None):
        od = out_dtype if out_dtype is not None else self.out_dtype
        return pos_embedding_forward(x, self.weight, out_dtype=od)


if __name__ == "__main__":
    # Small but representative shapes: H is a multiple of 128 (lane-dense stores).
    B, S, H = 2, 16, 128
    VOCAB = 32  # max positions stored in the embedding table

    key = jax.random.PRNGKey(0)
    kx, _ = jax.random.split(key)
    x = jax.random.normal(kx, (B, S, H), dtype=jnp.float32).astype(jnp.bfloat16)

    mod = PosEmbedding(hidden_size=H, vocab_size=VOCAB, out_dtype=jnp.bfloat16, seed=0)

    # Reference computed BEFORE the kernel call (x may be donated via aliasing).
    ref = (x.astype(jnp.float32) + mod.weight[:S].astype(jnp.float32)).astype(jnp.bfloat16)

    out = mod.forward(x)
    out = jax.block_until_ready(out)

    assert out.shape == (B, S, H)
    assert out.dtype == jnp.bfloat16
    assert jnp.allclose(out.astype(jnp.float32), ref.astype(jnp.float32), atol=1e-2)

    print("KERNEL_OK")
</pallas_src>

<mosaic_0001>
module attributes {stable_mosaic.version = 11 : i64} {
  func.func @_pos_embedding_kernel(%arg0: i32, %arg1: memref<2x8x128xbf16, #tpu.memory_space<vmem>>, %arg2: memref<8x128xbf16, #tpu.memory_space<vmem>>, %arg3: memref<2x8x128xbf16, #tpu.memory_space<vmem>>) attributes {dimension_semantics = [#tpu.dimension_semantics<parallel>], iteration_bounds = array<i64: 2>, scalar_prefetch = 0 : i64, scratch_operands = 0 : i64, tpu.core_type = #tpu.core_type<tc>, window_params = [{transform_indices = @transform_0, window_bounds = array<i64: 2, 8, 128>}, {transform_indices = @transform_1, window_bounds = array<i64: 8, 128>}, {transform_indices = @transform_2, window_bounds = array<i64: 2, 8, 128>}]} {
    %c0 = arith.constant 0 : index
    %c0_0 = arith.constant 0 : index
    %c0_1 = arith.constant 0 : index
    %0 = vector.load %arg1[%c0, %c0_0, %c0_1] : memref<2x8x128xbf16, #tpu.memory_space<vmem>>, vector<2x8x128xbf16>
    %1 = arith.extf %0 : vector<2x8x128xbf16> to vector<2x8x128xf32>
    %c0_2 = arith.constant 0 : index
    %c0_3 = arith.constant 0 : index
    %2 = vector.load %arg2[%c0_2, %c0_3] : memref<8x128xbf16, #tpu.memory_space<vmem>>, vector<8x128xbf16>
    %3 = arith.extf %2 : vector<8x128xbf16> to vector<8x128xf32>
    %4 = vector.shape_cast %3 : vector<8x128xf32> to vector<1x8x128xf32>
    %5 = vector.broadcast %4 : vector<1x8x128xf32> to vector<2x8x128xf32>
    %6 = arith.addf %1, %5 : vector<2x8x128xf32>
    %7 = arith.truncf %6 : vector<2x8x128xf32> to vector<2x8x128xbf16>
    %c0_4 = arith.constant 0 : index
    %c0_5 = arith.constant 0 : index
    %c0_6 = arith.constant 0 : index
    %8 = vector.load %arg3[%c0_4, %c0_5, %c0_6] : memref<2x8x128xbf16, #tpu.memory_space<vmem>>, vector<2x8x128xbf16>
    tpu.vector_store %arg3[%c0_4, %c0_5, %c0_6], %7 {strides = array<i32>} : memref<2x8x128xbf16, #tpu.memory_space<vmem>>, vector<2x8x128xbf16>,
    return
  }
  func.func @transform_0(%arg0: i32) -> (i32, i32, i32) {
    %c0_i32 = arith.constant 0 : i32
    %c0_i32_0 = arith.constant 0 : i32
    %c0_i32_1 = arith.constant 0 : i32
    return %c0_i32, %arg0, %c0_i32_0 : i32, i32, i32
  }
  func.func @transform_1(%arg0: i32) -> (i32, i32) {
    %c0_i32 = arith.constant 0 : i32
    %c0_i32_0 = arith.constant 0 : i32
    return %arg0, %c0_i32 : i32, i32
  }
  func.func @transform_2(%arg0: i32) -> (i32, i32, i32) {
    %c0_i32 = arith.constant 0 : i32
    %c0_i32_0 = arith.constant 0 : i32
    %c0_i32_1 = arith.constant 0 : i32
    return %c0_i32, %arg0, %c0_i32_0 : i32, i32, i32
  }
}

</mosaic_0001>

<llo_original>
// kernel: tpu_custom_call.1
$region0: #{tpu_custom_call.1}
  #allocation0 [shape = 'u32[]', space=smem, size = 0x4, offset = 0x4, fixed_abs, tag = 'smem constant byte address 0x4 - core index']
  #allocation1 [shape = 'u32[144,128]{1,0:T(1,128)}', space=vmem, size = 0x12000, scoped, tag = 'internal scratch']
  %s0 = inlined_call_operand.hbm [shape: bf16[2,16,128], index: 0, kind: input, shape index: {}, may-alias: {0,2}]
  %s1 = inlined_call_operand.vmem [shape: bf16[32,128], index: 1, kind: input, shape index: {}]
  %s2 = inlined_call_operand.hbm [shape: bf16[2,16,128], index: 2, kind: output, shape index: {}, may-alias: {0,2}]
  %s3 = sld [smem:[#allocation0]]
  $region45: #{tpu_custom_call.1} parent=0
    _
  %s5 = ssub.s32 1, %s3
  %s6 = scalar_select 0, %s5, %s3
  $region1: #{tpu_custom_call.1} parent=0
    #allocation2 [shape = 'u8[8192]{0}', space=vmem, size = 0x2000, scoped, tag = 'input window, operand 0']
    #allocation3 [shape = 's32[2]{0}', space=sflag, size = 0x8, scoped, tag = 'scoped memory for tpu_custom_call.1']
    #allocation4 [shape = 's32[2]{0}', space=sflag, size = 0x8, scoped, tag = 'scoped memory for tpu_custom_call.1']
    #allocation5 [shape = 'u8[8192]{0}', space=vmem, size = 0x2000, scoped, tag = 'output window, operand 0']
    %7 = vsyncpa [#allocation3], 0
    %s8 = scalar_lea.sflag [#allocation3], 1
    %9 = vsyncpa %s8, 0
    %10 = vsyncpa [#allocation4], 0
    %s11 = scalar_lea.sflag [#allocation4], 1
    %12 = vsyncpa %s11, 0
    loop: start=0, step=1, limit=4
    $region2: #{tpu_custom_call.1} parent=1 // loop_pre_header
      _
    $region3: #{tpu_custom_call.1} parent=1 // loop_header
      %s14 = sphi 0, %s18
      %p15 = scmp.ge.s32.totalorder %s14, 4
      %s24 = sphi 0, %s26
      %s27 = sphi 0, %s24
      %s28 = sphi 0, %s27
      %s44 = sphi 0, %s28
      %s50 = sphi 0, %s52
      %s53 = sphi 0, %s50
      %s54 = sphi 0, %s53
      %s70 = sphi 0, %s54
      %s76 = sphi 0, %s78
      %s79 = sphi 0, %s76
      %s80 = sphi 0, %s79
      %s96 = sphi 0, %s80
    $region4: #{tpu_custom_call.1} parent=1 // loop_header_branch
      %17 = sbr.rel (%p15) target = $region8
    $region5: #{tpu_custom_call.1} parent=1 // loop_body
      %s19 = ssub.s32 %s14, 1
      %s20 = ssub.s32 %s14, 2
      %s21 = sadd.s32 %s14, 1
      %s22 = ssub.s32 %s14, %s21
      %p23 = scmp.eq.s32.totalorder %s22, 0
      %s25 = sadd.s32 %s24, 1
      %s26 = scalar_select %p23, %s24, %s25
      %p29 = pneg %p23
      %p30 = scmp.eq.s32.totalorder %s14, 1
      %p31 = por %p29, %p30
      %p32 = scmp.ne.s32.totalorder %s24, %s27
      %p33 = scmp.eq.s32.totalorder %s14, 0
      %p34 = por %p32, %p33
      %p35 = scmp.ne.s32.totalorder %s24, %s27
      %p36 = scmp.eq.s32.totalorder %s19, 1
      %p37 = por %p35, %p36
      %p38 = scmp.ne.s32.totalorder %s27, %s28
      %p39 = scmp.eq.s32.totalorder %s19, 0
      %p40 = por %p38, %p39
      %p41 = scmp.ne.s32.totalorder %s27, %s28
      %p42 = scmp.eq.s32.totalorder %s20, 1
      %p43 = por %p41, %p42
      %p45 = scmp.ne.s32.totalorder %s28, %s44
      %p46 = scmp.eq.s32.totalorder %s20, 0
      %p47 = por %p45, %p46
      %s48 = ssub.s32 %s14, %s21
      %p49 = scmp.eq.s32.totalorder %s48, 0
      %s51 = sadd.s32 %s50, 1
      %s52 = scalar_select %p49, %s50, %s51
      %p55 = pneg %p49
      %p56 = scmp.eq.s32.totalorder %s14, 1
      %p57 = por %p55, %p56
      %p58 = scmp.ne.s32.totalorder %s50, %s53
      %p59 = scmp.eq.s32.totalorder %s14, 0
      %p60 = por %p58, %p59
      %p61 = scmp.ne.s32.totalorder %s50, %s53
      %p62 = scmp.eq.s32.totalorder %s19, 1
      %p63 = por %p61, %p62
      %p64 = scmp.ne.s32.totalorder %s53, %s54
      %p65 = scmp.eq.s32.totalorder %s19, 0
      %p66 = por %p64, %p65
      %p67 = scmp.ne.s32.totalorder %s53, %s54
      %p68 = scmp.eq.s32.totalorder %s20, 1
      %p69 = por %p67, %p68
      %p71 = scmp.ne.s32.totalorder %s54, %s70
      %p72 = scmp.eq.s32.totalorder %s20, 0
      %p73 = por %p71, %p72
      %s74 = ssub.s32 %s14, %s21
      %p75 = scmp.eq.s32.totalorder %s74, 0
      %s77 = sadd.s32 %s76, 1
      %s78 = scalar_select %p75, %s76, %s77
      %p81 = pneg %p75
      %p82 = scmp.eq.s32.totalorder %s14, 1
      %p83 = por %p81, %p82
      %p84 = scmp.ne.s32.totalorder %s76, %s79
      %p85 = scmp.eq.s32.totalorder %s14, 0
      %p86 = por %p84, %p85
      %p87 = scmp.ne.s32.totalorder %s76, %s79
      %p88 = scmp.eq.s32.totalorder %s19, 1
      %p89 = por %p87, %p88
      %p90 = scmp.ne.s32.totalorder %s79, %s80
      %p91 = scmp.eq.s32.totalorder %s19, 0
      %p92 = por %p90, %p91
      %p93 = scmp.ne.s32.totalorder %s79, %s80
      %p94 = scmp.eq.s32.totalorder %s20, 1
      %p95 = por %p93, %p94
      %p97 = scmp.ne.s32.totalorder %s80, %s96
      %p98 = scmp.eq.s32.totalorder %s20, 0
      %p99 = por %p97, %p98
      %p100 = scmp.le.s32.totalorder 1, %s14
      %p101 = scmp.lt.s32.totalorder %s14, 3
      %p102 = pnand %p100, %p101
      %p103 = pneg %p102
      // Predicated region
      $region9: #{tpu_custom_call.1} parent=5 // pred_check
        _
      $region10: #{tpu_custom_call.1} parent=5 // pred_check_branch
        %105 = sbr.rel (%p102) target = $region12
      $region11: #{tpu_custom_call.1} parent=5 // pred_region
        %s106 = ssub.s32 %s14, 1
      $region12: #{tpu_custom_call.1} parent=5 // pred_fallthru
        _
      %p107 = scmp.lt.s32.totalorder %s14, 2
      // Predicated region
      $region13: #{tpu_custom_call.1} parent=5 // pred_check
        %p108 = pneg %p107
      $region14: #{tpu_custom_call.1} parent=5 // pred_check_branch
        %110 = sbr.rel (%p108) target = $region16
      $region15: #{tpu_custom_call.1} parent=5 // pred_region
        // Predicated region
        $region17: #{tpu_custom_call.1} parent=15 // pred_check
          %p111 = pneg %p34
        $region18: #{tpu_custom_call.1} parent=15 // pred_check_branch
          %113 = sbr.rel (%p111) target = $region20
        $region19: #{tpu_custom_call.1} parent=15 // pred_region
          %s114 = sand.u32 %s24, 1
          %s115 = scalar_lea.sflag [#allocation3], %s114
          %s116 = sand.u32 %s24, 1
          %s117 = smul.addr %s116, 8
          %s118 = scalar_lea.vmem [#allocation2], %s117
          %s120 = ssub.s32 128, 128
          %121 = vsyncadd %s115, %s120
          %s122 = smul.addr %s14, 64
          %s123 = scalar_lea.hbm %s0, %s122
          %s124 = sshll.u32 %s118, 4
          %s125 = int_to_ptr.vmem [resolvable:$true] %s124
          %130 = dma.hbm_to_vmem [thread:$0]  %s123, 128, %s125, %s115, 128, 64, 4
        $region20: #{tpu_custom_call.1} parent=15 // pred_fallthru
          _
        // Predicated region
        $region21: #{tpu_custom_call.1} parent=15 // pred_check
          %p131 = pneg %p60
        $region22: #{tpu_custom_call.1} parent=15 // pred_check_branch
          %133 = sbr.rel (%p131) target = $region24
        $region23: #{tpu_custom_call.1} parent=15 // pred_region
          %p134 = scmp.lt.s32.totalorder %s14, 3
          %s135 = scalar_select %p134, %s14, 3
          %s136 = smul.addr %s135, 4
          %s137 = scalar_lea.vmem %s1, %s136
        $region24: #{tpu_custom_call.1} parent=15 // pred_fallthru
          _
      $region16: #{tpu_custom_call.1} parent=5 // pred_fallthru
        _
      %p138 = scmp.le.s32.totalorder 1, %s14
      %p139 = scmp.lt.s32.totalorder %s14, 3
      %p140 = pnand %p138, %p139
      %p141 = pneg %p140
      // Predicated region
      $region25: #{tpu_custom_call.1} parent=5 // pred_check
        _
      $region26: #{tpu_custom_call.1} parent=5 // pred_check_branch
        %143 = sbr.rel (%p140) target = $region28
      $region27: #{tpu_custom_call.1} parent=5 // pred_region
        %s144 = ssub.s32 %s14, 1
        %s145 = sand.u32 %s27, 1
        %s146 = scalar_lea.sflag [#allocation3], %s145
        %s147 = sand.u32 %s27, 1
        %s148 = smul.addr %s147, 8
        %s149 = scalar_lea.vmem [#allocation2], %s148
        // Predicated region
        $region29: #{tpu_custom_call.1} parent=27 // pred_check
          %p150 = pneg %p40
        $region30: #{tpu_custom_call.1} parent=27 // pred_check_branch
          %152 = sbr.rel (%p150) target = $region32
        $region31: #{tpu_custom_call.1} parent=27 // pred_region
          %153 = dma.done %s146, 128
        $region32: #{tpu_custom_call.1} parent=27 // pred_fallthru
          _
        %s154 = sand.u32 %s27, 1
        %s155 = scalar_lea.sflag [#allocation3], %s154
        %s156 = sand.u32 %s27, 1
        %s157 = smul.addr %s156, 8
        %s158 = scalar_lea.vmem [#allocation2], %s157
        %p159 = pneg %p40
        %p160 = pneg %p37
        %p161 = scmp.lt.s32.totalorder %s19, 3
        %s162 = scalar_select %p161, %s19, 3
        %s163 = smul.addr %s162, 4
        %s164 = scalar_lea.vmem %s1, %s163
        %p165 = pneg %p66
        %p166 = pneg %p63
        %p167 = pneg %p92
        %p168 = pneg %p89
        %s169 = sand.u32 %s79, 1
        %s170 = scalar_lea.sflag [#allocation4], %s169
        %s171 = sand.u32 %s79, 1
        %s172 = smul.addr %s171, 8
        %s173 = scalar_lea.vmem [#allocation5], %s172
        %p174 = scmp.lt.s32.totalorder %s19, 3
        %s175 = scalar_select %p174, %s19, 3
        %s176 = smul.addr %s175, 4
        %s177 = scalar_lea.vmem %s1, %s176
        %v178 = vld [vmem:[%s149] sm:$0xf]
        %v179 = vld [vmem:[%s149 + $0x4] sm:$0xf]
        %v180 = vunpack.c.l.bf16 %v178
        %v181 = vunpack.c.l.bf16 %v179
        %v182 = vld [vmem:[%s177] sm:$0xf]
        %v183 = vunpack.c.l.bf16 %v182
        %v184 = vadd.f32 %v180, %v183
        %v185 = vadd.f32 %v181, %v183
        %v186 = vpack.c.bf16 %v184, %v184
        %v187 = vpack.c.bf16 %v185, %v185
        %188 = vst [vmem:[%s173] sm:$0xf] %v186
        %189 = vst [vmem:[%s173 + $0x4] sm:$0xf] %v187
        %s190 = sand.u32 %s79, 1
        %s191 = scalar_lea.sflag [#allocation4], %s190
        %s192 = sand.u32 %s79, 1
        %s193 = smul.addr %s192, 8
        %s194 = scalar_lea.vmem [#allocation5], %s193
        // Predicated region
        $region33: #{tpu_custom_call.1} parent=27 // pred_check
          %p195 = pneg %p89
        $region34: #{tpu_custom_call.1} parent=27 // pred_check_branch
          %197 = sbr.rel (%p195) target = $region36
        $region35: #{tpu_custom_call.1} parent=27 // pred_region
          %s199 = ssub.s32 128, 128
          %200 = vsyncadd %s191, %s199
          %s201 = smul.addr %s19, 64
          %s202 = scalar_lea.hbm %s2, %s201
          %s203 = sshll.u32 %s194, 4
          %s204 = int_to_ptr.vmem [resolvable:$true] %s203
          %209 = dma.vmem_to_hbm [thread:$0]  %s204, 128, %s202, %s191, 64, 128, 4
        $region36: #{tpu_custom_call.1} parent=27 // pred_fallthru
          _
      $region28: #{tpu_custom_call.1} parent=5 // pred_fallthru
        _
      %p210 = scmp.le.s32.totalorder 2, %s14
      // Predicated region
      $region37: #{tpu_custom_call.1} parent=5 // pred_check
        %p211 = pneg %p210
      $region38: #{tpu_custom_call.1} parent=5 // pred_check_branch
        %213 = sbr.rel (%p211) target = $region40
      $region39: #{tpu_custom_call.1} parent=5 // pred_region
        %s214 = ssub.s32 %s14, 2
        // Predicated region
        $region41: #{tpu_custom_call.1} parent=39 // pred_check
          %p215 = pneg %p95
        $region42: #{tpu_custom_call.1} parent=39 // pred_check_branch
          %217 = sbr.rel (%p215) target = $region44
        $region43: #{tpu_custom_call.1} parent=39 // pred_region
          %s218 = sand.u32 %s80, 1
          %s219 = scalar_lea.sflag [#allocation4], %s218
          %s220 = sand.u32 %s80, 1
          %s221 = smul.addr %s220, 8
          %s222 = scalar_lea.vmem [#allocation5], %s221
          %223 = dma.done %s219, 128
        $region44: #{tpu_custom_call.1} parent=39 // pred_fallthru
          _
      $region40: #{tpu_custom_call.1} parent=5 // pred_fallthru
        _
    $region6: #{tpu_custom_call.1} parent=1 // loop_footer
      %s18 = sadd.s32 1, %s14
    $region7: #{tpu_custom_call.1} parent=1 // loop_footer_branch
      %13 = sbr.rel target = $region3
    $region8: #{tpu_custom_call.1} parent=1 // loop_exit
      _
    %224 = vsyncpa [#allocation3], 1
    %s225 = scalar_lea.sflag [#allocation3], 1
    %226 = vsyncpa %s225, 1
    %227 = vsyncpa [#allocation4], 1
    %s228 = scalar_lea.sflag [#allocation4], 1
    %229 = vsyncpa %s228, 1

</llo_original>
